<compile_context>
chip_gen: v5e
topology: v5e:2x2
jax: 0.10.0
libtpu: 0.0.40
codegen_flags: <defaults>
</compile_context>

<pallas_src>
import jax
import jax.numpy as jnp
from jax.experimental import pallas as pl
from jax.experimental.pallas import tpu as pltpu

INF = 1.0 * 1e12
_MIB = 1024 * 1024
_LANE = 128


def _cdiv(a, b):
    return -(-a // b)


def _round_up(a, b):
    return _cdiv(a, b) * b


def _vmem_plan():
    """(vmem_limit_bytes, per-step working-set budget) per TPU generation."""
    kind = ""
    try:
        kind = jax.devices()[0].device_kind.lower()
    except Exception:
        pass
    if "v7" in kind:
        # v7x: 64 MiB physical per TC (32 MiB scoped default) -> stay well below.
        return 48 * _MIB, 24 * _MIB
    if "v6" in kind or "v5" in kind:
        # v5e/v5p/v6e: 128 MiB physical; raise past the 16/32 MiB scoped default.
        return 96 * _MIB, 64 * _MIB
    # Unknown / older generation: conservative, fits every physical VMEM.
    return 32 * _MIB, 16 * _MIB


def _choose_tiling(B, S, H, itemsize, tb_override=None):
    """Pick batch tile TB, number of grid steps, padded batch, VMEM limit."""
    vmem_limit, budget = _vmem_plan()
    Bp8 = _round_up(B, 8)
    # f32 temporaries (x*wc product, att*x product) dominate in-kernel even for
    # bf16 inputs: budget ~ 2x double-buffered x block + ~2 f32 temps + slack.
    row_bytes = S * H * max(itemsize, 4)
    tb_budget = max(8, budget // (5 * row_bytes))

    if tb_override is not None:
        tb = max(8, _round_up(tb_override, 8))
    elif tb_budget >= Bp8 and Bp8 < 2 * _LANE:
        tb = Bp8                                   # small batch: one full-extent step
    else:
        # Keep >= 2 grid steps for large batches (feeds both v7x TensorCores).
        tb = min(tb_budget, max(_LANE, Bp8 // 2))
        if tb >= _LANE:
            tb128 = (tb // _LANE) * _LANE
            pad = _round_up(Bp8, tb128) - Bp8
            # Prefer a 128-multiple TB (lane-dense transposed stores) unless it
            # would pad the batch by more than ~25%.
            tb = tb128 if pad * 4 <= Bp8 else max(8, (tb // 8) * 8)
        else:
            tb = max(8, (tb // 8) * 8)

    n_steps = _cdiv(Bp8, tb)
    Bp = n_steps * tb
    return tb, n_steps, Bp, vmem_limit


def _make_kernel(has_mask, t_reps, t_attw):
    def body(x_ref, wc_ref, bc_ref, mask_ref, reps_ref, attw_ref):
        x = x_ref[...].astype(jnp.float32)           # (TB, S, H)
        wc = wc_ref[...]                              # (1, H)   = W @ ctx
        bc = bc_ref[0, 0]                             # scalar   = bias @ ctx (SMEM)

        # att_score[b, s] = sum_h x[b,s,h] * wc[h] + bc
        # TODO(synk): if the multiply does not fuse into the lane reduce in the
        # Mosaic MLIR, switch to a (TB*S, H) x (H, 1) dot to avoid the temp.
        score = jnp.sum(x * wc[None, :, :], axis=-1) + bc       # (TB, S) f32

        if has_mask:
            keep = mask_ref[...].astype(jnp.float32) > 0.0       # (TB, S)
            # exact match of score*mask + (-INF)*(1-mask) for a 0/1 mask
            score = jnp.where(keep, score, -INF)

        # Softmax over the sequence (lane) dimension; the finite -INF sentinel
        # keeps all-masked rows uniform (matches the reference) instead of NaN.
        m = jnp.max(score, axis=-1, keepdims=True)               # (TB, 1)
        e = jnp.exp(score - m)                                    # (TB, S)
        denom = jnp.sum(e, axis=-1, keepdims=True)                # (TB, 1)
        att = e * pl.reciprocal(denom, approx=False)              # (TB, S) f32

        # reps[b, h] = sum_s att[b,s] * x[b,s,h]
        # VPU broadcast-multiply + sublane reduce (no M=1 MXU matmuls); att
        # stays f32 for the weighted sum.
        reps = jnp.sum(att[:, :, None] * x, axis=1)               # (TB, H) f32

        if t_reps:
            reps_ref[...] = reps.T.astype(reps_ref.dtype)         # (H, TB) lane-dense
        else:
            reps_ref[...] = reps.astype(reps_ref.dtype)           # (TB, H)
        if t_attw:
            attw_ref[...] = att.T.astype(attw_ref.dtype)          # (S, TB) lane-dense
        else:
            attw_ref[...] = att.astype(attw_ref.dtype)            # (TB, S)

    if has_mask:
        def kernel(x_ref, wc_ref, bc_ref, mask_ref, reps_ref, attw_ref):
            body(x_ref, wc_ref, bc_ref, mask_ref, reps_ref, attw_ref)
    else:
        def kernel(x_ref, wc_ref, bc_ref, reps_ref, attw_ref):
            body(x_ref, wc_ref, bc_ref, None, reps_ref, attw_ref)
    return kernel


def self_interactive_attention(x, input_weight, bias, att_context_vector,
                               mask=None, tb=None):
    """
    x:                  (B, S, H)
    input_weight:       (1, H, H) float32
    bias:               (1, 1, H) float32
    att_context_vector: (1, H, 1) float32
    mask:               (B, S) bool / 0-1, or None
    returns: (reps (B, H), att_weight (B, S, 1))
    """
    B, S, H = x.shape
    w2d = input_weight.reshape(H, H).astype(jnp.float32)
    ctx = att_context_vector.reshape(H, 1).astype(jnp.float32)

    # Fold the context vector into weight/bias in the wrapper (exact up to f32
    # reassociation) -> kernel never sees the (H, H) weight or word_squish.
    wc = jnp.dot(w2d, ctx, preferred_element_type=jnp.float32).reshape(1, H)
    bc = jnp.dot(bias.reshape(1, H).astype(jnp.float32), ctx,
                 preferred_element_type=jnp.float32).reshape(1, 1)

    itemsize = jnp.dtype(x.dtype).itemsize
    tb, n_steps, Bp, vmem_limit = _choose_tiling(B, S, H, itemsize, tb)

    xp = x if Bp == B else jnp.pad(x, ((0, Bp - B), (0, 0), (0, 0)))

    in_specs = [
        pl.BlockSpec((tb, S, H), lambda i: (i, 0, 0)),              # x slab
        pl.BlockSpec((1, H), lambda i: (0, 0)),                     # W @ ctx
        pl.BlockSpec(memory_space=pltpu.MemorySpace.SMEM),          # bias @ ctx scalar
    ]
    args = [xp, wc, bc]

    has_mask = mask is not None
    if has_mask:
        m8 = mask.reshape(B, S).astype(jnp.int8)                    # narrow mask stream
        if Bp != B:
            m8 = jnp.pad(m8, ((0, Bp - B), (0, 0)))
        in_specs.append(pl.BlockSpec((tb, S), lambda i: (i, 0)))
        args.append(m8)

    # Lane-dense (transposed) output layout whenever it is legal: the block's
    # lane dim (tb) must be a multiple of 128 or the full padded batch.
    lane_ok = (n_steps == 1) or (tb % _LANE == 0)
    t_attw = (S < _LANE) and (S % 8 == 0) and lane_ok
    t_reps = (H < _LANE) and (H % 8 == 0) and lane_ok

    if t_reps:
        reps_shape = jax.ShapeDtypeStruct((H, Bp), x.dtype)
        reps_spec = pl.BlockSpec((H, tb), lambda i: (0, i))
    else:
        reps_shape = jax.ShapeDtypeStruct((Bp, H), x.dtype)
        reps_spec = pl.BlockSpec((tb, H), lambda i: (i, 0))
    if t_attw:
        attw_shape = jax.ShapeDtypeStruct((S, Bp), jnp.float32)
        attw_spec = pl.BlockSpec((S, tb), lambda i: (0, i))
    else:
        attw_shape = jax.ShapeDtypeStruct((Bp, S), jnp.float32)
        attw_spec = pl.BlockSpec((tb, S), lambda i: (i, 0))

    # TODO(synk): for sequences so long that even TB=8 exceeds the VMEM budget,
    # add an inner "arbitrary" S-tile axis with an online-softmax accumulator.
    reps, attw = pl.pallas_call(
        _make_kernel(has_mask, t_reps, t_attw),
        out_shape=(reps_shape, attw_shape),
        grid_spec=pltpu.PrefetchScalarGridSpec(
            num_scalar_prefetch=0,
            grid=(n_steps,),
            in_specs=in_specs,
            out_specs=[reps_spec, attw_spec],
        ),
        compiler_params=pltpu.CompilerParams(
            dimension_semantics=("parallel",),
            vmem_limit_bytes=vmem_limit,
        ),
    )(*args)

    if t_reps:
        reps = reps.T
    if t_attw:
        attw = attw.T
    reps = reps[:B]
    attw = attw[:B].reshape(B, S, 1)
    return reps, attw


def _reference(x, input_weight, bias, att_context_vector, mask=None):
    B, S, H = x.shape
    w = jnp.tile(input_weight, (B, 1, 1))
    b = jnp.tile(bias, (B, 1, 1))
    ctx = jnp.tile(att_context_vector, (B, 1, 1))
    word_squish = jnp.einsum("bsh,bhk->bsk", x, w) + b
    att_score = jnp.einsum("bsh,bhk->bsk", word_squish, ctx)       # (B, S, 1)
    if mask is not None:
        m = mask.astype(jnp.float32)[..., None]
        att_score = att_score * m + (-INF) * (1.0 - m)
    att_weight = jax.nn.softmax(att_score, axis=1)                  # (B, S, 1)
    reps = jnp.einsum("bhs,bsk->bhk", jnp.transpose(x, (0, 2, 1)),
                      att_weight).squeeze(-1)                       # (B, H)
    return reps, att_weight


if __name__ == "__main__":
    key = jax.random.PRNGKey(0)
    k_x, k_w, k_b, k_c, k_m = jax.random.split(key, 5)

    B, S, H = 2, 8, 32
    x = jax.random.normal(k_x, (B, S, H), dtype=jnp.float32)

    # Deterministic parameter init (shapes from the module __init__).
    input_weight = jax.random.normal(k_w, (1, H, H), dtype=jnp.float32) * 0.1
    bias = jax.random.normal(k_b, (1, 1, H), dtype=jnp.float32) * 0.1
    att_context_vector = jax.random.normal(k_c, (1, H, 1), dtype=jnp.float32) * 0.1

    # Boolean pad mask: True = keep token; ensure one valid token per row.
    mask = jax.random.bernoulli(k_m, p=0.8, shape=(B, S))
    mask = mask.at[:, 0].set(True)

    reps, attw = self_interactive_attention(x, input_weight, bias,
                                            att_context_vector, mask)
    jax.block_until_ready((reps, attw))

    reps_ref, attw_ref = _reference(x, input_weight, bias,
                                    att_context_vector, mask)
    assert reps.shape == (B, H) and attw.shape == (B, S, 1)
    assert jnp.allclose(reps, reps_ref, atol=1e-4, rtol=1e-4)
    assert jnp.allclose(attw, attw_ref, atol=1e-5, rtol=1e-5)

    # Also exercise the mask=None path (no mask stream DMA'd at all).
    reps2, attw2 = self_interactive_attention(x, input_weight, bias,
                                              att_context_vector, None)
    jax.block_until_ready((reps2, attw2))
    reps2_ref, attw2_ref = _reference(x, input_weight, bias,
                                      att_context_vector, None)
    assert jnp.allclose(reps2, reps2_ref, atol=1e-4, rtol=1e-4)
    assert jnp.allclose(attw2, attw2_ref, atol=1e-5, rtol=1e-5)

    print("KERNEL_OK")
</pallas_src>

<mosaic_0001>
module attributes {stable_mosaic.version = 11 : i64} {
  func.func @kernel(%arg0: i32, %arg1: memref<8x8x32xf32, #tpu.memory_space<vmem>>, %arg2: memref<1x32xf32, #tpu.memory_space<vmem>>, %arg3: memref<1x1xf32, #tpu.memory_space<smem>>, %arg4: memref<8x8xi8, #tpu.memory_space<vmem>>, %arg5: memref<32x8xf32, #tpu.memory_space<vmem>>, %arg6: memref<8x8xf32, #tpu.memory_space<vmem>>) attributes {dimension_semantics = [#tpu.dimension_semantics<parallel>], iteration_bounds = array<i64: 1>, scalar_prefetch = 0 : i64, scratch_operands = 0 : i64, tpu.core_type = #tpu.core_type<tc>, window_params = [{transform_indices = @transform_0, window_bounds = array<i64: 8, 8, 32>}, {pipeline_mode = #tpu.pipeline_mode<synchronous>, transform_indices = @transform_1, window_bounds = array<i64: 1, 32>}, {transform_indices = @transform_2, window_bounds = array<i64: 1, 1>}, {transform_indices = @transform_3, window_bounds = array<i64: 8, 8>}, {transform_indices = @transform_4, window_bounds = array<i64: 32, 8>}, {transform_indices = @transform_5, window_bounds = array<i64: 8, 8>}]} {
    %c0 = arith.constant 0 : index
    %c0_0 = arith.constant 0 : index
    %c0_1 = arith.constant 0 : index
    %0 = vector.load %arg1[%c0, %c0_0, %c0_1] : memref<8x8x32xf32, #tpu.memory_space<vmem>>, vector<8x8x32xf32>
    %c0_2 = arith.constant 0 : index
    %c0_3 = arith.constant 0 : index
    %1 = vector.load %arg2[%c0_2, %c0_3] : memref<1x32xf32, #tpu.memory_space<vmem>>, vector<1x32xf32>
    %c0_4 = arith.constant 0 : index
    %c0_5 = arith.constant 0 : index
    %2 = memref.load %arg3[%c0_4, %c0_5] : memref<1x1xf32, #tpu.memory_space<smem>>
    %3 = vector.shape_cast %1 : vector<1x32xf32> to vector<1x1x32xf32>
    %4 = vector.broadcast %3 : vector<1x1x32xf32> to vector<8x8x32xf32>
    %5 = arith.mulf %0, %4 : vector<8x8x32xf32>
    %cst = arith.constant dense<0.000000e+00> : vector<8x8xf32>
    %6 = vector.multi_reduction <add>, %5, %cst [2] : vector<8x8x32xf32> to vector<8x8xf32>
    %7 = vector.broadcast %2 : f32 to vector<8x8xf32>
    %8 = arith.addf %6, %7 : vector<8x8xf32>
    %c0_6 = arith.constant 0 : index
    %c0_7 = arith.constant 0 : index
    %9 = vector.load %arg4[%c0_6, %c0_7] : memref<8x8xi8, #tpu.memory_space<vmem>>, vector<8x8xi8>
    %10 = arith.sitofp %9 : vector<8x8xi8> to vector<8x8xf32>
    %cst_8 = arith.constant 0.000000e+00 : f32
    %11 = vector.broadcast %cst_8 : f32 to vector<8x8xf32>
    %12 = arith.cmpf ogt, %10, %11 : vector<8x8xf32>
    %cst_9 = arith.constant -9.99999995E+11 : f32
    %13 = vector.broadcast %cst_9 : f32 to vector<8x8xf32>
    %14 = arith.select %12, %8, %13 : vector<8x8xi1>, vector<8x8xf32>
    %cst_10 = arith.constant dense<0xFF800000> : vector<8xf32>
    %15 = vector.multi_reduction <maximumf>, %14, %cst_10 [1] : vector<8x8xf32> to vector<8xf32>
    %16 = vector.shape_cast %15 : vector<8xf32> to vector<8x1xf32>
    %17 = vector.broadcast %16 : vector<8x1xf32> to vector<8x8xf32>
    %18 = arith.subf %14, %17 : vector<8x8xf32>
    %19 = math.exp %18 : vector<8x8xf32>
    %cst_11 = arith.constant dense<0.000000e+00> : vector<8xf32>
    %20 = vector.multi_reduction <add>, %19, %cst_11 [1] : vector<8x8xf32> to vector<8xf32>
    %21 = vector.shape_cast %20 : vector<8xf32> to vector<8x1xf32>
    %22 = tpu.reciprocal %21 : vector<8x1xf32> -> vector<8x1xf32>
    %23 = vector.broadcast %22 : vector<8x1xf32> to vector<8x8xf32>
    %24 = arith.mulf %19, %23 : vector<8x8xf32>
    %25 = vector.shape_cast %24 : vector<8x8xf32> to vector<8x8x1xf32>
    %26 = vector.broadcast %25 : vector<8x8x1xf32> to vector<8x8x32xf32>
    %27 = arith.mulf %26, %0 : vector<8x8x32xf32>
    %cst_12 = arith.constant dense<0.000000e+00> : vector<8x32xf32>
    %28 = vector.multi_reduction <add>, %27, %cst_12 [1] : vector<8x8x32xf32> to vector<8x32xf32>
    %29 = tpu.transpose %28, [1, 0] : vector<8x32xf32> -> vector<32x8xf32>
    %c0_13 = arith.constant 0 : index
    %c0_14 = arith.constant 0 : index
    %30 = vector.load %arg5[%c0_13, %c0_14] : memref<32x8xf32, #tpu.memory_space<vmem>>, vector<32x8xf32>
    tpu.vector_store %arg5[%c0_13, %c0_14], %29 {strides = array<i32>} : memref<32x8xf32, #tpu.memory_space<vmem>>, vector<32x8xf32>,
    %31 = tpu.transpose %24, [1, 0] : vector<8x8xf32> -> vector<8x8xf32>
    %c0_15 = arith.constant 0 : index
    %c0_16 = arith.constant 0 : index
    %32 = vector.load %arg6[%c0_15, %c0_16] : memref<8x8xf32, #tpu.memory_space<vmem>>, vector<8x8xf32>
    tpu.vector_store %arg6[%c0_15, %c0_16], %31 {strides = array<i32>} : memref<8x8xf32, #tpu.memory_space<vmem>>, vector<8x8xf32>,
    return
  }
  func.func @transform_0(%arg0: i32) -> (i32, i32, i32) {
    %c0_i32 = arith.constant 0 : i32
    %c0_i32_0 = arith.constant 0 : i32
    %c0_i32_1 = arith.constant 0 : i32
    return %arg0, %c0_i32, %c0_i32_0 : i32, i32, i32
  }
  func.func @transform_1(%arg0: i32) -> (i32, i32) {
    %c0_i32 = arith.constant 0 : i32
    %c0_i32_0 = arith.constant 0 : i32
    %c0_i32_1 = arith.constant 0 : i32
    return %c0_i32, %c0_i32_0 : i32, i32
  }
  func.func @transform_2(%arg0: i32) -> (i32, i32) {
    %c0_i32 = arith.constant 0 : i32
    %c0_i32_0 = arith.constant 0 : i32
    %c0_i32_1 = arith.constant 0 : i32
    return %c0_i32, %c0_i32_0 : i32, i32
  }
  func.func @transform_3(%arg0: i32) -> (i32, i32) {
    %c0_i32 = arith.constant 0 : i32
    %c0_i32_0 = arith.constant 0 : i32
    return %arg0, %c0_i32 : i32, i32
  }
  func.func @transform_4(%arg0: i32) -> (i32, i32) {
    %c0_i32 = arith.constant 0 : i32
    %c0_i32_0 = arith.constant 0 : i32
    return %c0_i32, %arg0 : i32, i32
  }
  func.func @transform_5(%arg0: i32) -> (i32, i32) {
    %c0_i32 = arith.constant 0 : i32
    %c0_i32_0 = arith.constant 0 : i32
    return %c0_i32, %arg0 : i32, i32
  }
}

</mosaic_0001>

<llo_original>
// kernel: tpu_custom_call.1
$region0: #{tpu_custom_call.1}
  #allocation0 [shape = 'u32[]', space=smem, size = 0x4, offset = 0x4, fixed_abs, tag = 'smem constant byte address 0x4 - core index']
  #allocation1 [shape = 'u32[72,128]{1,0:T(1,128)}', space=vmem, size = 0x9000, scoped, tag = 'internal scratch']
  #allocation2 [shape = 'f32[1,1]{1,0:T(1,128)S(6)}', space=smem, size = 0x200, scoped, tag = 'scoped memory for tpu_custom_call.1']
  %s0 = inlined_call_operand.hbm [shape: f32[8,8,32], index: 0, kind: input, shape index: {}]
  %s1 = inlined_call_operand.vmem [shape: f32[1,32], index: 1, kind: input, shape index: {}]
  %s2 = inlined_call_operand.<no memory space> [shape: f32[1,1], index: 2, kind: input, shape index: {}]
  %s3 = inlined_call_operand.vmem [shape: s8[8,8], index: 3, kind: input, shape index: {}]
  %s4 = inlined_call_operand.vmem [shape: f32[32,8], index: 4, kind: output, shape index: {0}]
  %s5 = inlined_call_operand.hbm [shape: f32[8,8], index: 5, kind: output, shape index: {1}]
  %6 = xla_tuple %s4, %s5
  %s7 = sld [smem:[#allocation0]]
  $region38: #{tpu_custom_call.1} parent=0
    _
  %s9 = ssub.s32 1, %s7
  %s10 = scalar_select 0, %s9, %s7
  %11 = sst [smem:[#allocation2]] %s2
  $region1: #{tpu_custom_call.1} parent=0
    #allocation3 [shape = 'u8[32768]{0}', space=vmem, size = 0x8000, scoped, tag = 'input window, operand 0, single buffered']
    #allocation4 [shape = 's32[1]{0}', space=sflag, size = 0x4, scoped, tag = 'scoped memory for tpu_custom_call.1']
    #allocation5 [shape = 's32[1]{0}', space=sflag, size = 0x4, scoped, tag = 'scoped memory for tpu_custom_call.1']
    #allocation6 [shape = 'u8[4096]{0}', space=vmem, size = 0x1000, scoped, tag = 'output window, operand 1, single buffered']
    %12 = vsyncpa [#allocation4], 0
    %13 = vsyncpa [#allocation5], 0
    // Predicated region
    $region2: #{tpu_custom_call.1} parent=1 // pred_check
      _
    $region3: #{tpu_custom_call.1} parent=1 // pred_check_branch
      %15 = sbr.rel (0) target = $region5
    $region4: #{tpu_custom_call.1} parent=1 // pred_region
      %17 = vsyncadd [#allocation4], 0
      %s18 = sshll.u32 %s0, 4
      %s19 = int_to_ptr.hbm [resolvable:$true] %s18
      %s20 = sshll.u32 [#allocation3], 4
      %s21 = int_to_ptr.vmem [resolvable:$true] %s20
      %26 = dma.hbm_to_vmem [thread:$0]  %s19, 1024, %s21, [#allocation4], 128, 128, 8
    $region5: #{tpu_custom_call.1} parent=1 // pred_fallthru
      _
    // Predicated region
    $region6: #{tpu_custom_call.1} parent=1 // pred_check
      _
    $region7: #{tpu_custom_call.1} parent=1 // pred_check_branch
      %28 = sbr.rel (0) target = $region9
    $region8: #{tpu_custom_call.1} parent=1 // pred_region
      _
    $region9: #{tpu_custom_call.1} parent=1 // pred_fallthru
      _
    // Predicated region
    $region10: #{tpu_custom_call.1} parent=1 // pred_check
      _
    $region11: #{tpu_custom_call.1} parent=1 // pred_check_branch
      %30 = sbr.rel (0) target = $region13
    $region12: #{tpu_custom_call.1} parent=1 // pred_region
      _
    $region13: #{tpu_custom_call.1} parent=1 // pred_fallthru
      _
    // Predicated region
    $region14: #{tpu_custom_call.1} parent=1 // pred_check
      _
    $region15: #{tpu_custom_call.1} parent=1 // pred_check_branch
      %32 = sbr.rel (0) target = $region17
    $region16: #{tpu_custom_call.1} parent=1 // pred_region
      _
    $region17: #{tpu_custom_call.1} parent=1 // pred_fallthru
      _
    // Predicated region
    $region18: #{tpu_custom_call.1} parent=1 // pred_check
      _
    $region19: #{tpu_custom_call.1} parent=1 // pred_check_branch
      %34 = sbr.rel (0) target = $region21
    $region20: #{tpu_custom_call.1} parent=1 // pred_region
      %36 = dma.done [#allocation4], 1024
    $region21: #{tpu_custom_call.1} parent=1 // pred_fallthru
      _
    %v37 = vld [vmem:[#allocation3] sm:$0xff]
    %v38 = vld [vmem:[#allocation3 + $0x8] sm:$0xff]
    %v39 = vld [vmem:[#allocation3 + $0x10] sm:$0xff]
    %v40 = vld [vmem:[#allocation3 + $0x18] sm:$0xff]
    %v41 = vld [vmem:[#allocation3 + $0x20] sm:$0xff]
    %v42 = vld [vmem:[#allocation3 + $0x28] sm:$0xff]
    %v43 = vld [vmem:[#allocation3 + $0x30] sm:$0xff]
    %v44 = vld [vmem:[#allocation3 + $0x38] sm:$0xff]
    %v45 = vld [vmem:[%s1] sm:$0x1]
    %s46 = sld [smem:[#allocation2]]
    %v48 = vperm.slane %v45, 0
    %v50 = vmul.f32 %v37, %v48
    %v51 = vmul.f32 %v38, %v48
    %v52 = vmul.f32 %v39, %v48
    %v53 = vmul.f32 %v40, %v48
    %v54 = vmul.f32 %v41, %v48
    %v55 = vmul.f32 %v42, %v48
    %v56 = vmul.f32 %v43, %v48
    %v57 = vmul.f32 %v44, %v48
    %vm58 = vcmask 261120
    %v59 = vsel %vm58, %v50, 0.0
    %60 = vadd.xlane.f32.xlu0 %v59
    %v61 = vpop.xlane.xlu0 %60
    %v62 = vsel %vm58, %v51, 0.0
    %63 = vadd.xlane.f32.xlu0 %v62
    %v64 = vpop.xlane.xlu0 %63
    %v65 = vsel %vm58, %v52, 0.0
    %66 = vadd.xlane.f32.xlu0 %v65
    %v67 = vpop.xlane.xlu0 %66
    %v68 = vsel %vm58, %v53, 0.0
    %69 = vadd.xlane.f32.xlu0 %v68
    %v70 = vpop.xlane.xlu0 %69
    %v71 = vsel %vm58, %v54, 0.0
    %72 = vadd.xlane.f32.xlu0 %v71
    %v73 = vpop.xlane.xlu0 %72
    %v74 = vsel %vm58, %v55, 0.0
    %75 = vadd.xlane.f32.xlu0 %v74
    %v76 = vpop.xlane.xlu0 %75
    %v77 = vsel %vm58, %v56, 0.0
    %78 = vadd.xlane.f32.xlu0 %v77
    %v79 = vpop.xlane.xlu0 %78
    %v80 = vsel %vm58, %v57, 0.0
    %81 = vadd.xlane.f32.xlu0 %v80
    %v82 = vpop.xlane.xlu0 %81
    %v83 = vstv %s46
    %v84 = vadd.f32 %v61, %v83
    %v85 = vadd.f32 %v64, %v83
    %v86 = vadd.f32 %v67, %v83
    %v87 = vadd.f32 %v70, %v83
    %v88 = vadd.f32 %v73, %v83
    %v89 = vadd.f32 %v76, %v83
    %v90 = vadd.f32 %v79, %v83
    %v91 = vadd.f32 %v82, %v83
    %v92 = vld [vmem:[%s3] sm:$0x3]
    %v93 = vunpack.c.0.s8 %v92
    %v94 = vcvt.s32.f32 %v93
    %vm95 = vcmp.gt.f32.partialorder %v94, 0.0
    %v104 = vlaneseq
    %v105 = vand.u32 %v104, 127
    %v106 = vperm.slane %v84, %v105
    %v107 = vperm.slane %v85, %v105
    %v108 = vperm.slane %v86, %v105
    %v109 = vperm.slane %v87, %v105
    %v110 = vperm.slane %v88, %v105
    %v111 = vperm.slane %v89, %v105
    %v112 = vperm.slane %v90, %v105
    %v113 = vperm.slane %v91, %v105
    %vm114 = vcmask 1041409
    %v115 = vsel %vm114, %v107, %v106
    %vm116 = vcmask 1042434
    %v117 = vsel %vm116, %v108, %v115
    %vm118 = vcmask 1043459
    %v119 = vsel %vm118, %v109, %v117
    %vm120 = vcmask 1044484
    %v121 = vsel %vm120, %v110, %v119
    %vm122 = vcmask 1045509
    %v123 = vsel %vm122, %v111, %v121
    %vm124 = vcmask 1046534
    %v125 = vsel %vm124, %v112, %v123
    %vm126 = vcmask 1047559
    %v127 = vsel %vm126, %v113, %v125
    %v129 = vsel %vm95, %v127, -1e+12
    %vm130 = vcmask 64512
    %v131 = vsel %vm130, %v129, -inf
    %132 = vmax.xlane.f32.xlu0 %v131
    %v133 = vpop.xlane.xlu0 %132
    %v134 = vsub.f32 %v129, %v133
    %v135 = vmul.f32 %v134, 1.442695
    %v136 = vpow.pop %v135
    %v137 = vsel %vm130, %v136, 0.0
    %138 = vadd.xlane.f32.xlu0 %v137
    %v139 = vpop.xlane.xlu0 %138
    %v140 = vrcp.pop %v139
    %v141 = vmul.f32 %v139, %v140
    %v142 = vsub.f32 1.0, %v141
    %v143 = vmul.f32 %v140, %v142
    %v144 = vadd.f32 %v140, %v143
    %vm145 = vweird.f32 %v139
    %vm146 = vweird.f32 %v140
    %vm147 = vmor %vm145, %vm146
    %v148 = vsel %vm147, %v140, %v144
    %v149 = vand.u32 2147483647, %v139
    %vm150 = vcmp.eq.f32.partialorder %v149, 8.507059e+37
    %v151 = vand.u32 %v139, 2147483648
    %v152 = vor.u32 1.1754944e-38, %v151
    %v153 = vsel %vm150, %v152, %v148
    %v154 = vmul.f32 %v136, %v153
    %v155 = vperm.slane %v154, 0
    %v156 = vlaneseq
    %v157 = vshrl.u32 %v156, 7
    %159 = vset.pattern.permute.xlu0 %v157
    %160 = vperm.xlu0 %159, %v155
    %v161 = vpop.permute.xlu0 %160
    %v162 = vperm.slane %v154, 1
    %v163 = vlaneseq
    %v164 = vshrl.u32 %v163, 7
    %166 = vset.pattern.permute.xlu0 %v164
    %167 = vperm.xlu0 %166, %v162
    %v168 = vpop.permute.xlu0 %167
    %v169 = vperm.slane %v154, 2
    %v170 = vlaneseq
    %v171 = vshrl.u32 %v170, 7
    %173 = vset.pattern.permute.xlu0 %v171
    %174 = vperm.xlu0 %173, %v169
    %v175 = vpop.permute.xlu0 %174
    %v176 = vperm.slane %v154, 3
    %v177 = vlaneseq
    %v178 = vshrl.u32 %v177, 7
    %180 = vset.pattern.permute.xlu0 %v178
    %181 = vperm.xlu0 %180, %v176
    %v182 = vpop.permute.xlu0 %181
    %v183 = vperm.slane %v154, 4
    %v184 = vlaneseq
    %v185 = vshrl.u32 %v184, 7
    %187 = vset.pattern.permute.xlu0 %v185
    %188 = vperm.xlu0 %187, %v183
    %v189 = vpop.permute.xlu0 %188
    %v190 = vperm.slane %v154, 5
    %v191 = vlaneseq
    %v192 = vshrl.u32 %v191, 7
    %194 = vset.pattern.permute.xlu0 %v192
    %195 = vperm.xlu0 %194, %v190
    %v196 = vpop.permute.xlu0 %195
    %v197 = vperm.slane %v154, 6
    %v198 = vlaneseq
    %v199 = vshrl.u32 %v198, 7
    %201 = vset.pattern.permute.xlu0 %v199
    %202 = vperm.xlu0 %201, %v197
    %v203 = vpop.permute.xlu0 %202
    %v204 = vperm.slane %v154, 7
    %v205 = vlaneseq
    %v206 = vshrl.u32 %v205, 7
    %208 = vset.pattern.permute.xlu0 %v206
    %209 = vperm.xlu0 %208, %v204
    %v210 = vpop.permute.xlu0 %209
    %v211 = vmul.f32 %v161, %v37
    %v212 = vmul.f32 %v168, %v38
    %v213 = vmul.f32 %v175, %v39
    %v214 = vmul.f32 %v182, %v40
    %v215 = vmul.f32 %v189, %v41
    %v216 = vmul.f32 %v196, %v42
    %v217 = vmul.f32 %v203, %v43
    %v218 = vmul.f32 %v210, %v44
    %v219 = vsel %vm58, %v211, 0.0
    %v220 = vrot.slane %v219, 4
    %v221 = vadd.f32 %v219, %v220
    %v222 = vrot.slane %v221, 2
    %v223 = vadd.f32 %v221, %v222
    %v224 = vrot.slane %v223, 1
    %v225 = vadd.f32 %v223, %v224
    %v226 = vsel %vm58, %v212, 0.0
    %v227 = vrot.slane %v226, 4
    %v228 = vadd.f32 %v226, %v227
    %v229 = vrot.slane %v228, 2
    %v230 = vadd.f32 %v228, %v229
    %v231 = vrot.slane %v230, 1
    %v232 = vadd.f32 %v230, %v231
    %v233 = vsel %vm58, %v213, 0.0
    %v234 = vrot.slane %v233, 4
    %v235 = vadd.f32 %v233, %v234
    %v236 = vrot.slane %v235, 2
    %v237 = vadd.f32 %v235, %v236
    %v238 = vrot.slane %v237, 1
    %v239 = vadd.f32 %v237, %v238
    %v240 = vsel %vm58, %v214, 0.0
    %v241 = vrot.slane %v240, 4
    %v242 = vadd.f32 %v240, %v241
    %v243 = vrot.slane %v242, 2
    %v244 = vadd.f32 %v242, %v243
    %v245 = vrot.slane %v244, 1
    %v246 = vadd.f32 %v244, %v245
    %v247 = vsel %vm58, %v215, 0.0
    %v248 = vrot.slane %v247, 4
    %v249 = vadd.f32 %v247, %v248
    %v250 = vrot.slane %v249, 2
    %v251 = vadd.f32 %v249, %v250
    %v252 = vrot.slane %v251, 1
    %v253 = vadd.f32 %v251, %v252
    %v254 = vsel %vm58, %v216, 0.0
    %v255 = vrot.slane %v254, 4
    %v256 = vadd.f32 %v254, %v255
    %v257 = vrot.slane %v256, 2
    %v258 = vadd.f32 %v256, %v257
    %v259 = vrot.slane %v258, 1
    %v260 = vadd.f32 %v258, %v259
    %v261 = vsel %vm58, %v217, 0.0
    %v262 = vrot.slane %v261, 4
    %v263 = vadd.f32 %v261, %v262
    %v264 = vrot.slane %v263, 2
    %v265 = vadd.f32 %v263, %v264
    %v266 = vrot.slane %v265, 1
    %v267 = vadd.f32 %v265, %v266
    %v268 = vsel %vm58, %v218, 0.0
    %v269 = vrot.slane %v268, 4
    %v270 = vadd.f32 %v268, %v269
    %v271 = vrot.slane %v270, 2
    %v272 = vadd.f32 %v270, %v271
    %v273 = vrot.slane %v272, 1
    %v274 = vadd.f32 %v272, %v273
    %v283 = vsel %vm114, %v232, %v225
    %v284 = vsel %vm116, %v239, %v283
    %v285 = vsel %vm118, %v246, %v284
    %v286 = vsel %vm120, %v253, %v285
    %v287 = vsel %vm122, %v260, %v286
    %v288 = vsel %vm124, %v267, %v287
    %v289 = vsel %vm126, %v274, %v288
    %291 = vxpose.xlu0.b32.start [1/16] %v289, 128
    %292 = vxpose.xlu0.b32.cont [2/16] 0.0, 128
    %293 = vxpose.xlu0.b32.cont [3/16] 0.0, 128
    %294 = vxpose.xlu0.b32.cont [4/16] 0.0, 128
    %295 = vxpose.xlu0.b32.cont [5/16] 0.0, 128
    %296 = vxpose.xlu0.b32.cont [6/16] 0.0, 128
    %297 = vxpose.xlu0.b32.cont [7/16] 0.0, 128
    %298 = vxpose.xlu0.b32.cont [8/16] 0.0, 128
    %299 = vxpose.xlu0.b32.cont [9/16] 0.0, 128
    %300 = vxpose.xlu0.b32.cont [10/16] 0.0, 128
    %301 = vxpose.xlu0.b32.cont [11/16] 0.0, 128
    %302 = vxpose.xlu0.b32.cont [12/16] 0.0, 128
    %303 = vxpose.xlu0.b32.cont [13/16] 0.0, 128
    %304 = vxpose.xlu0.b32.cont [14/16] 0.0, 128
    %305 = vxpose.xlu0.b32.cont [15/16] 0.0, 128
    %306 = vxpose.xlu0.b32.end [16/16] 0.0, 128
    %v307 = vpop.trf.xlu0
    %v308 = vpop.trf.xlu0
    %v309 = vpop.trf.xlu0
    %v310 = vpop.trf.xlu0
    %v311 = vpop.trf.xlu0
    %v312 = vpop.trf.xlu0
    %v313 = vpop.trf.xlu0
    %v314 = vpop.trf.xlu0
    %v315 = vpop.trf.xlu0
    %v316 = vpop.trf.xlu0
    %v317 = vpop.trf.xlu0
    %v318 = vpop.trf.xlu0
    %v319 = vpop.trf.xlu0
    %v320 = vpop.trf.xlu0
    %v321 = vpop.trf.xlu0
    %v322 = vpop.trf.xlu0
    %323 = vst.msk [vmem:[%s4] sm:$0xff] %vm130, %v307
    %324 = vst.msk [vmem:[%s4 + $0x8] sm:$0xff] %vm130, %v308
    %325 = vst.msk [vmem:[%s4 + $0x10] sm:$0xff] %vm130, %v309
    %326 = vst.msk [vmem:[%s4 + $0x18] sm:$0xff] %vm130, %v310
    %327 = vxpose.xlu0.b32.start [1/16] %v154, 128
    %328 = vxpose.xlu0.b32.cont [2/16] 0.0, 128
    %329 = vxpose.xlu0.b32.cont [3/16] 0.0, 128
    %330 = vxpose.xlu0.b32.cont [4/16] 0.0, 128
    %331 = vxpose.xlu0.b32.cont [5/16] 0.0, 128
    %332 = vxpose.xlu0.b32.cont [6/16] 0.0, 128
    %333 = vxpose.xlu0.b32.cont [7/16] 0.0, 128
    %334 = vxpose.xlu0.b32.cont [8/16] 0.0, 128
    %335 = vxpose.xlu0.b32.cont [9/16] 0.0, 128
    %336 = vxpose.xlu0.b32.cont [10/16] 0.0, 128
    %337 = vxpose.xlu0.b32.cont [11/16] 0.0, 128
    %338 = vxpose.xlu0.b32.cont [12/16] 0.0, 128
    %339 = vxpose.xlu0.b32.cont [13/16] 0.0, 128
    %340 = vxpose.xlu0.b32.cont [14/16] 0.0, 128
    %341 = vxpose.xlu0.b32.cont [15/16] 0.0, 128
    %342 = vxpose.xlu0.b32.end [16/16] 0.0, 128
    %v343 = vpop.trf.xlu0
    %v344 = vpop.trf.xlu0
    %v345 = vpop.trf.xlu0
    %v346 = vpop.trf.xlu0
    %v347 = vpop.trf.xlu0
    %v348 = vpop.trf.xlu0
    %v349 = vpop.trf.xlu0
    %v350 = vpop.trf.xlu0
    %v351 = vpop.trf.xlu0
    %v352 = vpop.trf.xlu0
    %v353 = vpop.trf.xlu0
    %v354 = vpop.trf.xlu0
    %v355 = vpop.trf.xlu0
    %v356 = vpop.trf.xlu0
    %v357 = vpop.trf.xlu0
    %v358 = vpop.trf.xlu0
    %359 = vst.msk [vmem:[#allocation6] sm:$0xff] %vm130, %v343
    // Predicated region
    $region22: #{tpu_custom_call.1} parent=1 // pred_check
      _
    $region23: #{tpu_custom_call.1} parent=1 // pred_check_branch
      %361 = sbr.rel (0) target = $region25
    $region24: #{tpu_custom_call.1} parent=1 // pred_region
      _
    $region25: #{tpu_custom_call.1} parent=1 // pred_fallthru
      _
    // Predicated region
    $region26: #{tpu_custom_call.1} parent=1 // pred_check
      _
    $region27: #{tpu_custom_call.1} parent=1 // pred_check_branch
      %363 = sbr.rel (0) target = $region29
    $region28: #{tpu_custom_call.1} parent=1 // pred_region
      %365 = vsyncadd [#allocation5], 0
      %s367 = sshll.u32 [#allocation6], 4
      %s368 = int_to_ptr.vmem [resolvable:$true] %s367
      %s369 = sshll.u32 %s5, 4
      %s370 = int_to_ptr.hbm [resolvable:$true] %s369
      %372 = dma.vmem_to_hbm [thread:$0]  %s368, 128, %s370, [#allocation5]
    $region29: #{tpu_custom_call.1} parent=1 // pred_fallthru
      _
    // Predicated region
    $region30: #{tpu_custom_call.1} parent=1 // pred_check
      _
    $region31: #{tpu_custom_call.1} parent=1 // pred_check_branch
      %374 = sbr.rel (0) target = $region33
    $region32: #{tpu_custom_call.1} parent=1 // pred_region
      _
    $region33: #{tpu_custom_call.1} parent=1 // pred_fallthru
      _
    // Predicated region
    $region34: #{tpu_custom_call.1} parent=1 // pred_check
      _
    $region35: #{tpu_custom_call.1} parent=1 // pred_check_branch
      %376 = sbr.rel (0) target = $region37
    $region36: #{tpu_custom_call.1} parent=1 // pred_region
      %378 = dma.done [#allocation5], 128
    $region37: #{tpu_custom_call.1} parent=1 // pred_fallthru
      _
    %379 = vsyncpa [#allocation4], 1
    %380 = vsyncpa [#allocation5], 1

</llo_original>
